<compile_context>
chip_gen: v7x
topology: tpu7x:2x2x1
jax: 0.10.0
libtpu: 0.0.40
codegen_flags: <defaults>
</compile_context>

<pallas_src>
import jax
import jax.numpy as jnp
from jax.experimental import pallas as pl
from jax.experimental.pallas import tpu as pltpu

LANE = 128
SUBLANE = 8


def _round_up(x, m):
    return ((x + m - 1) // m) * m


def _quick_gelu(x):
    # Real CLIP uses QuickGELU: x * sigmoid(1.702 x)  (EUP sigmoid, VPU mul), f32.
    return x * jax.nn.sigmoid(1.702 * x)


def _choose_tiling(batch_pad, num_patches, target_rows=512):
    """Pick (images_per_group, images_per_inner_tile).

    images_per_group: outer 'parallel' grid axis unit; 8 images -> sublane-dense
      (8, 128) output store and enough rows for the projection/logits matmuls.
    images_per_inner_tile: inner 'arbitrary' axis unit; inner tiles cover whole
      images (rows = ipt * num_patches), aim for ~target_rows rows per tile so the
      patch-embed DMA pipelines at ~85% of HBM roofline, with row count a multiple
      of 8 so patch-tile loads are unmasked.
    """
    ipg = SUBLANE  # batch_pad is always a multiple of 8, so this divides it
    candidates = [d for d in range(1, ipg + 1)
                  if ipg % d == 0 and (d * num_patches) % SUBLANE == 0]
    fitting = [d for d in candidates if d * num_patches <= target_rows]
    ipt = max(fitting) if fitting else min(candidates)
    return ipg, ipt


def _vmem_limit_bytes(tm, pd_pad, d, f_pad, k_pad, ipg):
    bf16, f32 = 2, 4
    patches = 2 * tm * pd_pad * bf16                                   # dbl-buffered tile
    weights = 2 * (pd_pad * d + d * f_pad + f_pad * k_pad) * bf16      # resident weights
    out = 2 * ipg * k_pad * f32
    scratch = ipg * d * f32
    interm = 2 * tm * d * f32                                          # emb + slack
    total = patches + weights + out + scratch + interm
    # generous headroom, clamped to stay within v7x's 64 MiB physical VMEM per core
    return min(max(2 * total + (4 << 20), 16 << 20), 64 << 20)


# ----------------------------------------------------------------------------
# Single fused kernel: patch-embed -> QuickGELU -> mean-pool (accumulated) ->
#                      project -> L2-normalize -> logits (all on-chip).
# Grid: (image_groups [parallel], patch-row tiles per group [arbitrary]).
# ----------------------------------------------------------------------------
def make_fused_kernel(imgs_per_group, imgs_per_tile, num_patches, embed_dim):
    tiles_per_group = imgs_per_group // imgs_per_tile

    def fused_kernel(patch_ref, w1_ref, wproj_ref, txt_t_ref, o_ref, pooled_acc):
        # patch_ref : (TM, Pd_pad)   bf16  raw patches + ones bias column, zero pad cols
        # w1_ref    : (Pd_pad, D)    bf16  patch-embed with (x-mean)/std and b1 folded in
        # wproj_ref : (D, F_pad)     bf16  projection, zero-padded to 128 lanes
        # txt_t_ref : (F_pad, K_pad) bf16  pre-L2-normalized, pre-scaled, transposed text
        # o_ref     : (IB, K_pad)    f32   logits for this image group (resident block)
        # pooled_acc: (IB, D)        f32   VMEM scratch, per-group pooled accumulator
        t = pl.program_id(1)

        @pl.when(t == 0)
        def _init():
            pooled_acc[...] = jnp.zeros_like(pooled_acc)

        # 1) patch embed (MXU, bf16 in / f32 acc); normalization + bias folded into w1.
        emb = jnp.dot(patch_ref[...], w1_ref[...],
                      preferred_element_type=jnp.float32)              # (TM, D) f32
        emb = _quick_gelu(emb)                                         # f32 VPU/EUP

        # 2) per-image mean-pool of this tile's (complete) images: leading-axis
        #    reshape + mean(axis=1) -- no per-image slicing, no concatenate.
        pooled_tile = jnp.mean(
            emb.reshape(imgs_per_tile, num_patches, embed_dim), axis=1)  # (ipt, D)
        row0 = pl.multiple_of(t * imgs_per_tile, imgs_per_tile)
        pooled_acc[pl.ds(row0, imgs_per_tile), :] = pooled_tile

        # 3) finalize this group: projection -> L2 normalize -> logits.
        @pl.when(t == tiles_per_group - 1)
        def _finalize():
            img = jnp.dot(pooled_acc[...].astype(wproj_ref.dtype), wproj_ref[...],
                          preferred_element_type=jnp.float32)          # (IB, F_pad) f32
            # padded tail lanes are zero -> no effect on the norm
            inv = jax.lax.rsqrt(jnp.sum(img * img, axis=-1, keepdims=True) + 1e-12)
            img_n = img * inv
            # logit_scale * txt_n already baked into txt_t_ref; contract on last axis.
            o_ref[...] = jnp.dot(img_n.astype(txt_t_ref.dtype), txt_t_ref[...],
                                 preferred_element_type=jnp.float32)

    return fused_kernel


def vlm_forward_fused(patches, w1, wproj, txt_t, *, batch_pad, num_patches,
                      imgs_per_group, imgs_per_tile, embed_dim):
    pd_pad = patches.shape[1]
    f_pad = wproj.shape[1]
    k_pad = txt_t.shape[1]
    num_groups = batch_pad // imgs_per_group
    tiles_per_group = imgs_per_group // imgs_per_tile
    tm = imgs_per_tile * num_patches

    kernel = make_fused_kernel(imgs_per_group, imgs_per_tile, num_patches, embed_dim)
    return pl.pallas_call(
        kernel,
        out_shape=jax.ShapeDtypeStruct((batch_pad, k_pad), jnp.float32),
        grid=(num_groups, tiles_per_group),
        in_specs=[
            # pipelined patch tiles: row-block index advances with (group, tile)
            pl.BlockSpec((tm, pd_pad),
                         lambda g, t: (g * tiles_per_group + t, 0)),
            # weights: constant block index -> DMA'd once, VMEM-resident
            pl.BlockSpec(w1.shape, lambda g, t: (0, 0)),
            pl.BlockSpec(wproj.shape, lambda g, t: (0, 0)),
            pl.BlockSpec(txt_t.shape, lambda g, t: (0, 0)),
        ],
        # output block resident across the inner (arbitrary) axis, one block per group
        out_specs=pl.BlockSpec((imgs_per_group, k_pad), lambda g, t: (g, 0)),
        scratch_shapes=[pltpu.VMEM((imgs_per_group, embed_dim), jnp.float32)],
        compiler_params=pltpu.CompilerParams(
            dimension_semantics=("parallel", "arbitrary"),
            vmem_limit_bytes=_vmem_limit_bytes(tm, pd_pad, embed_dim, f_pad,
                                               k_pad, imgs_per_group)),
    )(patches, w1, wproj, txt_t)


# ----------------------------------------------------------------------------
# Glue: patch extraction (plain JAX reshape/transpose feeding the fused kernel).
# ----------------------------------------------------------------------------
def extract_patches(x_nchw, patch, pd_pad, batch_pad, dtype=jnp.bfloat16):
    # (B, C, H, W) -> (batch_pad * (H/P) * (W/P), pd_pad), batch-major rows,
    # (C, P, P)-ordered columns, zero-padded columns + rows. Column `pd` is an
    # all-ones bias column that activates the folded-bias row of w1.
    B, C, H, W = x_nchw.shape
    P = patch
    n_p = (H // P) * (W // P)
    pd = C * P * P
    x = x_nchw.reshape(B, C, H // P, P, W // P, P)
    x = jnp.transpose(x, (0, 2, 4, 1, 3, 5))              # (B, H/P, W/P, C, P, P)
    pt = x.reshape(B * n_p, pd)
    out = jnp.zeros((batch_pad * n_p, pd_pad), jnp.float32)
    out = out.at[:B * n_p, :pd].set(pt)
    out = out.at[:, pd].set(1.0)                           # bias-activation column
    return out.astype(dtype)


class VisionLanguageModelPallas:
    """Synthetic CLIP-style vision-language model; forward pass in one fused Pallas kernel."""

    def __init__(self, key, in_channels=3, image_size=16, patch=8,
                 embed_dim=128, feat_dim=64, num_classes=16):
        self.in_channels = in_channels
        self.image_size = image_size
        self.patch = patch
        self.num_patches = (image_size // patch) ** 2
        self.embed_dim = embed_dim
        self.feat_dim = feat_dim
        self.num_classes = num_classes

        # CLIP normalization constants (exact values from the PyTorch module).
        mean = jnp.asarray([0.48145466, 0.4578275, 0.40821073], dtype=jnp.float32)
        std = jnp.asarray([0.26862954, 0.26130258, 0.27577711], dtype=jnp.float32)

        k1, k2, k3 = jax.random.split(key, 3)
        pd = in_channels * patch * patch
        w1 = (jax.random.normal(k1, (pd, embed_dim), jnp.float32) / jnp.sqrt(pd))
        wproj = (jax.random.normal(k2, (embed_dim, feat_dim), jnp.float32)
                 / jnp.sqrt(embed_dim))
        # Precomputed "text_features" (stand-in for encode_text over imagenet labels).
        text_features = jax.random.normal(k3, (num_classes, feat_dim), jnp.float32)
        logit_scale = 100.0  # exp(learned logit_scale) in real CLIP

        # f32 reference copies (for the correctness check in __main__).
        self.ref = dict(w1=w1, wproj=wproj, text=text_features,
                        mean=mean, std=std, logit_scale=logit_scale)

        # ---- fold (x - mean)/std into the patch-embed weights -----------------
        # Patch columns are ordered (C, P, P): channel of column j is j // (P*P).
        std_exp = jnp.repeat(std, patch * patch)           # (pd,)
        mean_exp = jnp.repeat(mean, patch * patch)         # (pd,)
        w1_folded = w1 / std_exp[:, None]
        b1 = -(mean_exp / std_exp) @ w1                    # (embed_dim,)

        # ---- pad to lane-dense / MXU-friendly shapes; fold b1 into pad row pd --
        self.pd = pd
        self.pd_pad = _round_up(pd + 1, LANE)              # 192 (+1 bias col) -> 256
        w1_pad = jnp.zeros((self.pd_pad, embed_dim), jnp.float32)
        w1_pad = w1_pad.at[:pd].set(w1_folded)
        w1_pad = w1_pad.at[pd].set(b1)                     # bias row, hit by ones column
        self.w1_pad = w1_pad.astype(jnp.bfloat16)

        self.f_pad = _round_up(feat_dim, LANE)             # 64 -> 128
        wproj_pad = jnp.zeros((embed_dim, self.f_pad), jnp.float32)
        wproj_pad = wproj_pad.at[:, :feat_dim].set(wproj)
        self.wproj_pad = wproj_pad.astype(jnp.bfloat16)

        # ---- pre-normalize + pre-scale + pre-transpose text features ----------
        txt_n = text_features * jax.lax.rsqrt(
            jnp.sum(text_features * text_features, axis=-1, keepdims=True) + 1e-12)
        txt_t = (logit_scale * txt_n).T                    # (feat_dim, num_classes)
        self.k_pad = _round_up(num_classes, LANE)          # 16 -> 128
        txt_t_pad = jnp.zeros((self.f_pad, self.k_pad), jnp.float32)
        txt_t_pad = txt_t_pad.at[:feat_dim, :num_classes].set(txt_t)
        self.txt_t_pad = txt_t_pad.astype(jnp.bfloat16)

    def forward(self, x_nchw):
        B = x_nchw.shape[0]
        b_pad = _round_up(B, SUBLANE)                      # sublane-dense output store
        imgs_per_group, imgs_per_tile = _choose_tiling(b_pad, self.num_patches)
        patches = extract_patches(x_nchw, self.patch, self.pd_pad, b_pad)
        logits_pad = vlm_forward_fused(
            patches, self.w1_pad, self.wproj_pad, self.txt_t_pad,
            batch_pad=b_pad, num_patches=self.num_patches,
            imgs_per_group=imgs_per_group, imgs_per_tile=imgs_per_tile,
            embed_dim=self.embed_dim)
        return logits_pad[:B, :self.num_classes]

    __call__ = forward


# ----------------------------------------------------------------------------
# Pure-JAX f32 reference of the same forward (mirrors the PyTorch semantics:
# normalize -> encode_image -> L2-normalize both -> scaled logits_per_image).
# ----------------------------------------------------------------------------
def reference_forward(model, x_nchw):
    r = model.ref
    B, C, H, W = x_nchw.shape
    P = model.patch
    xn = (x_nchw - r["mean"][None, :, None, None]) / r["std"][None, :, None, None]
    xp = xn.reshape(B, C, H // P, P, W // P, P).transpose(0, 2, 4, 1, 3, 5)
    pt = xp.reshape(B * model.num_patches, C * P * P)
    emb = _quick_gelu(pt @ r["w1"])
    pooled = emb.reshape(B, model.num_patches, model.embed_dim).mean(axis=1)
    img = pooled @ r["wproj"]
    img_n = img / jnp.linalg.norm(img, axis=-1, keepdims=True)
    txt_n = r["text"] / jnp.linalg.norm(r["text"], axis=-1, keepdims=True)
    return r["logit_scale"] * (img_n @ txt_n.T)


if __name__ == "__main__":
    key = jax.random.PRNGKey(0)
    k_model, k_data = jax.random.split(key)

    model = VisionLanguageModelPallas(k_model, in_channels=3, image_size=16,
                                      patch=8, embed_dim=128, feat_dim=64,
                                      num_classes=16)

    # Input images in [0, 1], NCHW like the PyTorch module.
    x = jax.random.uniform(k_data, (2, 3, 16, 16), dtype=jnp.float32)

    logits = model(x)
    jax.block_until_ready(logits)

    assert logits.shape == (2, 16)
    assert logits.dtype == jnp.float32
    assert bool(jnp.all(jnp.isfinite(logits)))

    # Correctness vs the f32 reference (bf16 MXU operands -> lenient tolerance).
    ref = reference_forward(model, x)
    max_err = float(jnp.max(jnp.abs(logits - ref)))
    scale = float(jnp.max(jnp.abs(ref)))
    assert max_err <= 0.05 * scale + 0.25, (max_err, scale)

    print("KERNEL_OK")
</pallas_src>

<mosaic_0001>
module attributes {stable_mosaic.version = 11 : i64} {
  func.func @fused_kernel(%arg0: i32, %arg1: i32, %arg2: memref<32x256xbf16, #tpu.memory_space<vmem>>, %arg3: memref<256x128xbf16, #tpu.memory_space<vmem>>, %arg4: memref<128x128xbf16, #tpu.memory_space<vmem>>, %arg5: memref<128x128xbf16, #tpu.memory_space<vmem>>, %arg6: memref<8x128xf32, #tpu.memory_space<vmem>>, %arg7: memref<8x128xf32, #tpu.memory_space<vmem>>) attributes {dimension_semantics = [#tpu.dimension_semantics<parallel>, #tpu.dimension_semantics<arbitrary>], iteration_bounds = array<i64: 1, 1>, scalar_prefetch = 0 : i64, scratch_operands = 1 : i64, tpu.core_type = #tpu.core_type<tc>, window_params = [{transform_indices = @transform_0, window_bounds = array<i64: 32, 256>}, {pipeline_mode = #tpu.pipeline_mode<synchronous>, transform_indices = @transform_1, window_bounds = array<i64: 256, 128>}, {pipeline_mode = #tpu.pipeline_mode<synchronous>, transform_indices = @transform_2, window_bounds = array<i64: 128, 128>}, {pipeline_mode = #tpu.pipeline_mode<synchronous>, transform_indices = @transform_3, window_bounds = array<i64: 128, 128>}, {transform_indices = @transform_4, window_bounds = array<i64: 8, 128>}]} {
    %c0_i32 = arith.constant 0 : i32
    %0 = arith.cmpi eq, %arg1, %c0_i32 : i32
    %1 = arith.extui %0 : i1 to i32
    %c0_i32_0 = arith.constant 0 : i32
    %2 = arith.cmpi ne, %1, %c0_i32_0 : i32
    scf.if %2 {
      %cst_11 = arith.constant 0.000000e+00 : f32
      %25 = vector.broadcast %cst_11 : f32 to vector<8x128xf32>
      %c0_12 = arith.constant 0 : index
      %c0_13 = arith.constant 0 : index
      %26 = vector.load %arg7[%c0_12, %c0_13] : memref<8x128xf32, #tpu.memory_space<vmem>>, vector<8x128xf32>
      tpu.vector_store %arg7[%c0_12, %c0_13], %25 {strides = array<i32>} : memref<8x128xf32, #tpu.memory_space<vmem>>, vector<8x128xf32>,
    } else {
    }
    %c0 = arith.constant 0 : index
    %c0_1 = arith.constant 0 : index
    %3 = vector.load %arg2[%c0, %c0_1] : memref<32x256xbf16, #tpu.memory_space<vmem>>, vector<32x256xbf16>
    %c0_2 = arith.constant 0 : index
    %c0_3 = arith.constant 0 : index
    %4 = vector.load %arg3[%c0_2, %c0_3] : memref<256x128xbf16, #tpu.memory_space<vmem>>, vector<256x128xbf16>
    %cst = arith.constant dense<0.000000e+00> : vector<32x128xf32>
    %5 = tpu.matmul %3, %4, %cst {dimension_numbers = #tpu.dot_dimension_numbers<[1], [0], [0], [1], [0, 0, 1, 1], [], []>} : vector<32x256xbf16>, vector<256x128xbf16>, vector<32x128xf32> -> vector<32x128xf32>
    %cst_4 = arith.constant 1.702000e+00 : f32
    %6 = vector.broadcast %cst_4 : f32 to vector<32x128xf32>
    %7 = arith.mulf %6, %5 : vector<32x128xf32>
    %8 = arith.negf %7 : vector<32x128xf32>
    %9 = math.exp %8 : vector<32x128xf32>
    %cst_5 = arith.constant 1.000000e+00 : f32
    %10 = vector.broadcast %cst_5 : f32 to vector<32x128xf32>
    %11 = arith.addf %10, %9 : vector<32x128xf32>
    %12 = arith.divf %10, %11 : vector<32x128xf32>
    %13 = arith.mulf %5, %12 : vector<32x128xf32>
    %14 = vector.shape_cast %13 : vector<32x128xf32> to vector<8x4x128xf32>
    %cst_6 = arith.constant dense<0.000000e+00> : vector<8x128xf32>
    %15 = vector.multi_reduction <add>, %14, %cst_6 [1] : vector<8x4x128xf32> to vector<8x128xf32>
    %cst_7 = arith.constant 4.000000e+00 : f32
    %16 = vector.broadcast %cst_7 : f32 to vector<8x128xf32>
    %17 = arith.divf %15, %16 : vector<8x128xf32>
    %c8_i32 = arith.constant 8 : i32
    %18 = arith.muli %arg1, %c8_i32 : i32
    %19 = tpu.assume_multiple %18, 8 : i32
    %20 = arith.index_cast %19 : i32 to index
    %c0_8 = arith.constant 0 : index
    %21 = vector.load %arg7[%20, %c0_8] : memref<8x128xf32, #tpu.memory_space<vmem>>, vector<8x128xf32>
    tpu.vector_store %arg7[%20, %c0_8], %17 {strides = array<i32>} : memref<8x128xf32, #tpu.memory_space<vmem>>, vector<8x128xf32>,
    %c0_i32_9 = arith.constant 0 : i32
    %22 = arith.cmpi eq, %arg1, %c0_i32_9 : i32
    %23 = arith.extui %22 : i1 to i32
    %c0_i32_10 = arith.constant 0 : i32
    %24 = arith.cmpi ne, %23, %c0_i32_10 : i32
    scf.if %24 {
      %c0_11 = arith.constant 0 : index
      %c0_12 = arith.constant 0 : index
      %25 = vector.load %arg7[%c0_11, %c0_12] : memref<8x128xf32, #tpu.memory_space<vmem>>, vector<8x128xf32>
      %26 = arith.truncf %25 : vector<8x128xf32> to vector<8x128xbf16>
      %c0_13 = arith.constant 0 : index
      %c0_14 = arith.constant 0 : index
      %27 = vector.load %arg4[%c0_13, %c0_14] : memref<128x128xbf16, #tpu.memory_space<vmem>>, vector<128x128xbf16>
      %cst_15 = arith.constant dense<0.000000e+00> : vector<8x128xf32>
      %28 = tpu.matmul %26, %27, %cst_15 {dimension_numbers = #tpu.dot_dimension_numbers<[1], [0], [0], [1], [0, 0, 1, 1], [], []>} : vector<8x128xbf16>, vector<128x128xbf16>, vector<8x128xf32> -> vector<8x128xf32>
      %29 = arith.mulf %28, %28 : vector<8x128xf32>
      %cst_16 = arith.constant dense<0.000000e+00> : vector<8xf32>
      %30 = vector.multi_reduction <add>, %29, %cst_16 [1] : vector<8x128xf32> to vector<8xf32>
      %31 = vector.shape_cast %30 : vector<8xf32> to vector<8x1xf32>
      %cst_17 = arith.constant 9.99999996E-13 : f32
      %32 = vector.broadcast %cst_17 : f32 to vector<8x1xf32>
      %33 = arith.addf %31, %32 : vector<8x1xf32>
      %34 = math.rsqrt %33 : vector<8x1xf32>
      %35 = vector.broadcast %34 : vector<8x1xf32> to vector<8x128xf32>
      %36 = arith.mulf %28, %35 : vector<8x128xf32>
      %37 = arith.truncf %36 : vector<8x128xf32> to vector<8x128xbf16>
      %c0_18 = arith.constant 0 : index
      %c0_19 = arith.constant 0 : index
      %38 = vector.load %arg5[%c0_18, %c0_19] : memref<128x128xbf16, #tpu.memory_space<vmem>>, vector<128x128xbf16>
      %cst_20 = arith.constant dense<0.000000e+00> : vector<8x128xf32>
      %39 = tpu.matmul %37, %38, %cst_20 {dimension_numbers = #tpu.dot_dimension_numbers<[1], [0], [0], [1], [0, 0, 1, 1], [], []>} : vector<8x128xbf16>, vector<128x128xbf16>, vector<8x128xf32> -> vector<8x128xf32>
      %c0_21 = arith.constant 0 : index
      %c0_22 = arith.constant 0 : index
      %40 = vector.load %arg6[%c0_21, %c0_22] : memref<8x128xf32, #tpu.memory_space<vmem>>, vector<8x128xf32>
      tpu.vector_store %arg6[%c0_21, %c0_22], %39 {strides = array<i32>} : memref<8x128xf32, #tpu.memory_space<vmem>>, vector<8x128xf32>,
    } else {
    }
    return
  }
  func.func @transform_0(%arg0: i32, %arg1: i32) -> (i32, i32) {
    %c1_i32 = arith.constant 1 : i32
    %0 = arith.muli %arg0, %c1_i32 : i32
    %1 = arith.addi %0, %arg1 : i32
    %c0_i32 = arith.constant 0 : i32
    %c0_i32_0 = arith.constant 0 : i32
    return %1, %c0_i32 : i32, i32
  }
  func.func @transform_1(%arg0: i32, %arg1: i32) -> (i32, i32) {
    %c0_i32 = arith.constant 0 : i32
    %c0_i32_0 = arith.constant 0 : i32
    %c0_i32_1 = arith.constant 0 : i32
    return %c0_i32, %c0_i32_0 : i32, i32
  }
  func.func @transform_2(%arg0: i32, %arg1: i32) -> (i32, i32) {
    %c0_i32 = arith.constant 0 : i32
    %c0_i32_0 = arith.constant 0 : i32
    %c0_i32_1 = arith.constant 0 : i32
    return %c0_i32, %c0_i32_0 : i32, i32
  }
  func.func @transform_3(%arg0: i32, %arg1: i32) -> (i32, i32) {
    %c0_i32 = arith.constant 0 : i32
    %c0_i32_0 = arith.constant 0 : i32
    %c0_i32_1 = arith.constant 0 : i32
    return %c0_i32, %c0_i32_0 : i32, i32
  }
  func.func @transform_4(%arg0: i32, %arg1: i32) -> (i32, i32) {
    %c0_i32 = arith.constant 0 : i32
    %c0_i32_0 = arith.constant 0 : i32
    return %arg0, %c0_i32 : i32, i32
  }
}

</mosaic_0001>

<llo_original>
// kernel: tpu_custom_call.1
$region0: #{tpu_custom_call.1}
  #allocation0 [shape = 'u32[]', space=smem, size = 0x4, offset = 0x4, fixed_abs, tag = 'smem constant byte address 0x4 - core index']
  #allocation1 [shape = 'u32[144,128]{1,0:T(1,128)}', space=vmem, size = 0x12000, scoped, tag = 'internal scratch']
  #allocation2 [shape = 'f32[8,128]{1,0:T(8,128)}', space=vmem, size = 0x1000, scoped, tag = 'scratch operand']
  %s0 = inlined_call_operand.hbm [shape: bf16[32,256], index: 0, kind: input, shape index: {}]
  %s1 = inlined_call_operand.hbm [shape: bf16[256,128], index: 1, kind: input, shape index: {}]
  %s2 = inlined_call_operand.hbm [shape: bf16[128,128], index: 2, kind: input, shape index: {}]
  %s3 = inlined_call_operand.hbm [shape: bf16[128,128], index: 3, kind: input, shape index: {}]
  %s4 = inlined_call_operand.hbm [shape: f32[8,128], index: 4, kind: output, shape index: {}]
  %s5 = sld [smem:[#allocation0]]
  $region50: #{tpu_custom_call.1} parent=0
    _
  %s7 = ssub.s32 1, %s5
  %s8 = scalar_select 0, %s7, %s5
  $region1: #{tpu_custom_call.1} parent=0
    #allocation3 [shape = 'u8[16384]{0}', space=vmem, size = 0x4000, scoped, tag = 'input window, operand 0, single buffered']
    #allocation4 [shape = 's32[1]{0}', space=sflag, size = 0x4, scoped, tag = 'scoped memory for tpu_custom_call.1']
    #allocation5 [shape = 's32[1]{0}', space=sflag, size = 0x4, scoped, tag = 'scoped memory for tpu_custom_call.1']
    #allocation6 [shape = 'u8[65536]{0}', space=vmem, size = 0x10000, scoped, tag = 'input window, operand 1, single buffered']
    #allocation7 [shape = 's32[1]{0}', space=sflag, size = 0x4, scoped, tag = 'scoped memory for tpu_custom_call.1']
    #allocation8 [shape = 'u8[32768]{0}', space=vmem, size = 0x8000, scoped, tag = 'input window, operand 2, single buffered']
    #allocation9 [shape = 'u8[32768]{0}', space=vmem, size = 0x8000, scoped, tag = 'input window, operand 3, single buffered']
    #allocation10 [shape = 's32[1]{0}', space=sflag, size = 0x4, scoped, tag = 'scoped memory for tpu_custom_call.1']
    #allocation11 [shape = 'u8[4096]{0}', space=vmem, size = 0x1000, scoped, tag = 'output window, operand 0, single buffered']
    %9 = vsyncpa [#allocation4], 0
    %10 = vsyncpa [#allocation7], 0
    %11 = vsyncpa [#allocation10], 0
    %12 = vsyncpa [#allocation5], 0
    // Predicated region
    $region2: #{tpu_custom_call.1} parent=1 // pred_check
      _
    $region3: #{tpu_custom_call.1} parent=1 // pred_check_branch
      %14 = sbr.rel (0) target = $region5
    $region4: #{tpu_custom_call.1} parent=1 // pred_region
      %s15 = sadd.s32 0, 0
      %s16 = smul.u32 4, %s15
      %s18 = ssub.s32 512, 512
      %19 = vsyncadd [#allocation4], %s18
      %s20 = smul.addr %s16, 2
      %s21 = smul.addr %s20, 64
      %s22 = scalar_lea.hbm %s0, %s21
      %s23 = sshll.u32 [#allocation3], 4
      %s24 = int_to_ptr.vmem [resolvable:$true] %s23
      %29 = dma.hbm_to_vmem [thread:$0]  %s22, 512, %s24, [#allocation4], 128, 128, 8
    $region5: #{tpu_custom_call.1} parent=1 // pred_fallthru
      _
    // Predicated region
    $region6: #{tpu_custom_call.1} parent=1 // pred_check
      _
    $region7: #{tpu_custom_call.1} parent=1 // pred_check_branch
      %31 = sbr.rel (0) target = $region9
    $region8: #{tpu_custom_call.1} parent=1 // pred_region
      %s33 = ssub.s32 2048, 2048
      %34 = vsyncadd [#allocation7], %s33
      %s35 = sshll.u32 [#allocation6], 4
      %s36 = int_to_ptr.vmem [resolvable:$true] %s35
      %41 = dma.hbm_to_vmem [thread:$0]  %s1, 2048, %s36, [#allocation7], 64, 64, 4
    $region9: #{tpu_custom_call.1} parent=1 // pred_fallthru
      _
    // Predicated region
    $region10: #{tpu_custom_call.1} parent=1 // pred_check
      _
    $region11: #{tpu_custom_call.1} parent=1 // pred_check_branch
      %43 = sbr.rel (0) target = $region13
    $region12: #{tpu_custom_call.1} parent=1 // pred_region
      %s45 = ssub.s32 1024, 1024
      %46 = vsyncadd [#allocation7], %s45
      %s47 = sshll.u32 [#allocation8], 4
      %s48 = int_to_ptr.vmem [resolvable:$true] %s47
      %53 = dma.hbm_to_vmem [thread:$0]  %s2, 1024, %s48, [#allocation7], 64, 64, 4
    $region13: #{tpu_custom_call.1} parent=1 // pred_fallthru
      _
    // Predicated region
    $region14: #{tpu_custom_call.1} parent=1 // pred_check
      _
    $region15: #{tpu_custom_call.1} parent=1 // pred_check_branch
      %55 = sbr.rel (0) target = $region17
    $region16: #{tpu_custom_call.1} parent=1 // pred_region
      %s57 = ssub.s32 1024, 1024
      %58 = vsyncadd [#allocation10], %s57
      %s59 = sshll.u32 [#allocation9], 4
      %s60 = int_to_ptr.vmem [resolvable:$true] %s59
      %65 = dma.hbm_to_vmem [thread:$0]  %s3, 1024, %s60, [#allocation10], 64, 64, 4
    $region17: #{tpu_custom_call.1} parent=1 // pred_fallthru
      _
    // Predicated region
    $region18: #{tpu_custom_call.1} parent=1 // pred_check
      _
    $region19: #{tpu_custom_call.1} parent=1 // pred_check_branch
      %67 = sbr.rel (0) target = $region21
    $region20: #{tpu_custom_call.1} parent=1 // pred_region
      %68 = dma.done [#allocation4], 512
    $region21: #{tpu_custom_call.1} parent=1 // pred_fallthru
      _
    // Predicated region
    $region22: #{tpu_custom_call.1} parent=1 // pred_check
      _
    $region23: #{tpu_custom_call.1} parent=1 // pred_check_branch
      %70 = sbr.rel (0) target = $region25
    $region24: #{tpu_custom_call.1} parent=1 // pred_region
      %71 = dma.done [#allocation7], 2048
    $region25: #{tpu_custom_call.1} parent=1 // pred_fallthru
      _
    // Predicated region
    $region26: #{tpu_custom_call.1} parent=1 // pred_check
      _
    $region27: #{tpu_custom_call.1} parent=1 // pred_check_branch
      %73 = sbr.rel (0) target = $region29
    $region28: #{tpu_custom_call.1} parent=1 // pred_region
      %74 = dma.done [#allocation7], 1024
    $region29: #{tpu_custom_call.1} parent=1 // pred_fallthru
      _
    // Predicated region
    $region30: #{tpu_custom_call.1} parent=1 // pred_check
      _
    $region31: #{tpu_custom_call.1} parent=1 // pred_check_branch
      %76 = sbr.rel (0) target = $region33
    $region32: #{tpu_custom_call.1} parent=1 // pred_region
      %77 = dma.done [#allocation10], 1024
    $region33: #{tpu_custom_call.1} parent=1 // pred_fallthru
      _
    %s78 = sadd.s32 0, 0
    %s79 = smul.u32 4, %s78
    %p81 = scmp.eq.s32.totalorder 0, 0
    // Predicated region
    $region34: #{tpu_custom_call.1} parent=1 // pred_check
      %p82 = pneg %p81
    $region35: #{tpu_custom_call.1} parent=1 // pred_check_branch
      %84 = sbr.rel (%p82) target = $region37
    $region36: #{tpu_custom_call.1} parent=1 // pred_region
      %85 = vst [vmem:[#allocation2] sm:$0xff] 0.0
    $region37: #{tpu_custom_call.1} parent=1 // pred_fallthru
      _
    %v86 = vld [vmem:[#allocation3] sm:$0xff]
    %v87 = vld [vmem:[#allocation3 + $0x8] sm:$0xff]
    %v88 = vld [vmem:[#allocation3 + $0x10] sm:$0xff]
    %v89 = vld [vmem:[#allocation3 + $0x18] sm:$0xff]
    %v90 = vld [vmem:[#allocation6] sm:$0xf]
    %v91 = vld [vmem:[#allocation6 + $0x4] sm:$0xf]
    %v92 = vld [vmem:[#allocation6 + $0x8] sm:$0xf]
    %v93 = vld [vmem:[#allocation6 + $0xc] sm:$0xf]
    %v94 = vld [vmem:[#allocation6 + $0x10] sm:$0xf]
    %v95 = vld [vmem:[#allocation6 + $0x14] sm:$0xf]
    %v96 = vld [vmem:[#allocation6 + $0x18] sm:$0xf]
    %v97 = vld [vmem:[#allocation6 + $0x1c] sm:$0xf]
    %v98 = vld [vmem:[#allocation6 + $0x20] sm:$0xf]
    %v99 = vld [vmem:[#allocation6 + $0x24] sm:$0xf]
    %v100 = vld [vmem:[#allocation6 + $0x28] sm:$0xf]
    %v101 = vld [vmem:[#allocation6 + $0x2c] sm:$0xf]
    %v102 = vld [vmem:[#allocation6 + $0x30] sm:$0xf]
    %v103 = vld [vmem:[#allocation6 + $0x34] sm:$0xf]
    %v104 = vld [vmem:[#allocation6 + $0x38] sm:$0xf]
    %v105 = vld [vmem:[#allocation6 + $0x3c] sm:$0xf]
    %v106 = vld [vmem:[#allocation6 + $0x40] sm:$0xf]
    %v107 = vld [vmem:[#allocation6 + $0x44] sm:$0xf]
    %v108 = vld [vmem:[#allocation6 + $0x48] sm:$0xf]
    %v109 = vld [vmem:[#allocation6 + $0x4c] sm:$0xf]
    %v110 = vld [vmem:[#allocation6 + $0x50] sm:$0xf]
    %v111 = vld [vmem:[#allocation6 + $0x54] sm:$0xf]
    %v112 = vld [vmem:[#allocation6 + $0x58] sm:$0xf]
    %v113 = vld [vmem:[#allocation6 + $0x5c] sm:$0xf]
    %v114 = vld [vmem:[#allocation6 + $0x60] sm:$0xf]
    %v115 = vld [vmem:[#allocation6 + $0x64] sm:$0xf]
    %v116 = vld [vmem:[#allocation6 + $0x68] sm:$0xf]
    %v117 = vld [vmem:[#allocation6 + $0x6c] sm:$0xf]
    %v118 = vld [vmem:[#allocation6 + $0x70] sm:$0xf]
    %v119 = vld [vmem:[#allocation6 + $0x74] sm:$0xf]
    %v120 = vld [vmem:[#allocation6 + $0x78] sm:$0xf]
    %v121 = vld [vmem:[#allocation6 + $0x7c] sm:$0xf]
    %v126 = vunpack.c.l.b16 %v86
    %v127 = vunpack.c.h.b16 %v86
    %v128 = vunpack.c.l.b16 %v87
    %v129 = vunpack.c.h.b16 %v87
    %v130 = vunpack.c.l.b16 %v88
    %v131 = vunpack.c.h.b16 %v88
    %v132 = vunpack.c.l.b16 %v89
    %v133 = vunpack.c.h.b16 %v89
    %v134 = vpack.c.b16 %v128, %v126
    %v135 = vpack.c.b16 %v129, %v127
    %v136 = vpack.c.b16 %v132, %v130
    %v137 = vpack.c.b16 %v133, %v131
    %v174 = vunpack.c.l.b16 %v90
    %v175 = vunpack.c.l.b16 %v91
    %v176 = vunpack.c.l.b16 %v92
    %v177 = vunpack.c.l.b16 %v93
    %v178 = vunpack.c.l.b16 %v94
    %v179 = vunpack.c.l.b16 %v95
    %v180 = vunpack.c.l.b16 %v96
    %v181 = vunpack.c.l.b16 %v97
    %v182 = vunpack.c.l.b16 %v98
    %v183 = vunpack.c.l.b16 %v99
    %v184 = vunpack.c.l.b16 %v100
    %v185 = vunpack.c.l.b16 %v101
    %v186 = vunpack.c.l.b16 %v102
    %v187 = vunpack.c.l.b16 %v103
    %v188 = vunpack.c.l.b16 %v104
    %v189 = vunpack.c.l.b16 %v105
    %v190 = vunpack.c.l.b16 %v106
    %v191 = vunpack.c.l.b16 %v107
    %v192 = vunpack.c.l.b16 %v108
    %v193 = vunpack.c.l.b16 %v109
    %v194 = vunpack.c.l.b16 %v110
    %v195 = vunpack.c.l.b16 %v111
    %v196 = vunpack.c.l.b16 %v112
    %v197 = vunpack.c.l.b16 %v113
    %v198 = vunpack.c.l.b16 %v114
    %v199 = vunpack.c.l.b16 %v115
    %v200 = vunpack.c.l.b16 %v116
    %v201 = vunpack.c.l.b16 %v117
    %v202 = vunpack.c.l.b16 %v118
    %v203 = vunpack.c.l.b16 %v119
    %v204 = vunpack.c.l.b16 %v120
    %v205 = vunpack.c.l.b16 %v121
    %v206 = vpack.c.b16 %v175, %v174
    %v207 = vpack.c.b16 %v177, %v176
    %v208 = vpack.c.b16 %v179, %v178
    %v209 = vpack.c.b16 %v181, %v180
    %v210 = vpack.c.b16 %v183, %v182
    %v211 = vpack.c.b16 %v185, %v184
    %v212 = vpack.c.b16 %v187, %v186
    %v213 = vpack.c.b16 %v189, %v188
    %v214 = vpack.c.b16 %v191, %v190
    %v215 = vpack.c.b16 %v193, %v192
    %v216 = vpack.c.b16 %v195, %v194
    %v217 = vpack.c.b16 %v197, %v196
    %v218 = vpack.c.b16 %v199, %v198
    %v219 = vpack.c.b16 %v201, %v200
    %v220 = vpack.c.b16 %v203, %v202
    %v221 = vpack.c.b16 %v205, %v204
    %238 = vmatprep.subr.bf16.mxu0 0
    %239 = vmatpush1.bf16.msra.mxu0 %v206
    %240 = vmatprep.subr.bf16.mxu0 0
    %241 = vmatpush1.bf16.msra.mxu0 %v207
    %242 = vmatprep.subr.bf16.mxu0 0
    %243 = vmatpush1.bf16.msra.mxu0 %v208
    %244 = vmatprep.subr.bf16.mxu0 0
    %245 = vmatpush1.bf16.msra.mxu0 %v209
    %246 = vmatprep.subr.bf16.mxu0 0
    %247 = vmatpush1.bf16.msra.mxu0 %v210
    %248 = vmatprep.subr.bf16.mxu0 0
    %249 = vmatpush1.bf16.msra.mxu0 %v211
    %250 = vmatprep.subr.bf16.mxu0 0
    %251 = vmatpush1.bf16.msra.mxu0 %v212
    %252 = vmatprep.subr.bf16.mxu0 0
    %253 = vmatpush1.bf16.msra.mxu0 %v213
    %254 = vmatprep.subr.bf16.mxu0 0
    %255 = vmatpush1.bf16.msra.mxu0 %v214
    %256 = vmatprep.subr.bf16.mxu0 0
    %257 = vmatpush1.bf16.msra.mxu0 %v215
    %258 = vmatprep.subr.bf16.mxu0 0
    %259 = vmatpush1.bf16.msra.mxu0 %v216
    %260 = vmatprep.subr.bf16.mxu0 0
    %261 = vmatpush1.bf16.msra.mxu0 %v217
    %262 = vmatprep.subr.bf16.mxu0 0
    %263 = vmatpush1.bf16.msra.mxu0 %v218
    %264 = vmatprep.subr.bf16.mxu0 0
    %265 = vmatpush1.bf16.msra.mxu0 %v219
    %266 = vmatprep.subr.bf16.mxu0 0
    %267 = vmatpush1.bf16.msra.mxu0 %v220
    %268 = vmatprep.subr.bf16.mxu0 0
    %269 = vmatpush1.bf16.msra.mxu0 %v221
    %270 = vmatprep.mubr.bf16.mxu0 %v135
    %271 = vmatmul.mubr.bf16.gmra.mrb[0].mxu0 %v134
    %v272 = vpop.f32.mrb[0].mxu0
    %v273 = vadd.f32 0.0, %v272
    %v274 = vpop.f32.mrb[0].mxu0
    %v275 = vpop.f32.mrb[0].mxu0
    %v276 = vadd.f32 0.0, %v275
    %v277 = vpop.f32.mrb[0].mxu0
    %278 = vmatprep.mubr.bf16.mxu0 %v137
    %279 = vmatmul.mubr.bf16.gmra.mrb[0].mxu0 %v136
    %v280 = vpop.f32.mrb[0].mxu0
    %v281 = vadd.f32 0.0, %v280
    %v282 = vpop.f32.mrb[0].mxu0
    %v283 = vpop.f32.mrb[0].mxu0
    %v284 = vadd.f32 0.0, %v283
    %v285 = vpop.f32.mrb[0].mxu0
    %286 = vdwg.mxu0
    %v287 = vmul.f32 %v273, 1.702
    %v288 = vmul.f32 %v276, 1.702
    %v289 = vmul.f32 %v281, 1.702
    %v290 = vmul.f32 %v284, 1.702
    %v291 = vxor.u32 %v287, 2147483648
    %v292 = vxor.u32 %v288, 2147483648
    %v293 = vxor.u32 %v289, 2147483648
    %v294 = vxor.u32 %v290, 2147483648
    %v295 = vmul.f32 %v291, 1.442695
    %v296 = vpow.pop %v295
    %v297 = vmul.f32 %v292, 1.442695
    %v298 = vpow.pop %v297
    %v299 = vmul.f32 %v293, 1.442695
    %v300 = vpow.pop %v299
    %v301 = vmul.f32 %v294, 1.442695
    %v302 = vpow.pop %v301
    %v303 = vadd.f32 %v296, 1.0
    %v304 = vadd.f32 %v298, 1.0
    %v305 = vadd.f32 %v300, 1.0
    %v306 = vadd.f32 %v302, 1.0
    %v307 = vrcp.pop %v303
    %v308 = vmul.f32 1.0, %v307
    %v309 = vrcp.pop %v304
    %v310 = vmul.f32 1.0, %v309
    %v311 = vrcp.pop %v305
    %v312 = vmul.f32 1.0, %v311
    %v313 = vrcp.pop %v306
    %v314 = vmul.f32 1.0, %v313
    %v315 = vmul.f32 %v273, %v308
    %v316 = vmul.f32 %v276, %v310
    %v317 = vmul.f32 %v281, %v312
    %v318 = vmul.f32 %v284, %v314
    %v323 = vcombine.high %v315, %v315
    %v324 = vcombine.high %v316, %v316
    %v325 = vcombine.high %v317, %v317
    %v326 = vcombine.high %v318, %v318
    %vm331 = vcmask 1043456
    %v332 = vsel %vm331, %v315, 0.0
    %v333 = vrot.slane %v332, 4
    %v334 = vadd.f32 %v332, %v333
    %v335 = vrot.slane %v334, 2
    %v336 = vadd.f32 %v334, %v335
    %v337 = vrot.slane %v336, 1
    %v338 = vadd.f32 %v336, %v337
    %v339 = vsel %vm331, %v323, 0.0
    %v340 = vrot.slane %v339, 4
    %v341 = vadd.f32 %v339, %v340
    %v342 = vrot.slane %v341, 2
    %v343 = vadd.f32 %v341, %v342
    %v344 = vrot.slane %v343, 1
    %v345 = vadd.f32 %v343, %v344
    %v346 = vsel %vm331, %v316, 0.0
    %v347 = vrot.slane %v346, 4
    %v348 = vadd.f32 %v346, %v347
    %v349 = vrot.slane %v348, 2
    %v350 = vadd.f32 %v348, %v349
    %v351 = vrot.slane %v350, 1
    %v352 = vadd.f32 %v350, %v351
    %v353 = vsel %vm331, %v324, 0.0
    %v354 = vrot.slane %v353, 4
    %v355 = vadd.f32 %v353, %v354
    %v356 = vrot.slane %v355, 2
    %v357 = vadd.f32 %v355, %v356
    %v358 = vrot.slane %v357, 1
    %v359 = vadd.f32 %v357, %v358
    %v360 = vsel %vm331, %v317, 0.0
    %v361 = vrot.slane %v360, 4
    %v362 = vadd.f32 %v360, %v361
    %v363 = vrot.slane %v362, 2
    %v364 = vadd.f32 %v362, %v363
    %v365 = vrot.slane %v364, 1
    %v366 = vadd.f32 %v364, %v365
    %v367 = vsel %vm331, %v325, 0.0
    %v368 = vrot.slane %v367, 4
    %v369 = vadd.f32 %v367, %v368
    %v370 = vrot.slane %v369, 2
    %v371 = vadd.f32 %v369, %v370
    %v372 = vrot.slane %v371, 1
    %v373 = vadd.f32 %v371, %v372
    %v374 = vsel %vm331, %v318, 0.0
    %v375 = vrot.slane %v374, 4
    %v376 = vadd.f32 %v374, %v375
    %v377 = vrot.slane %v376, 2
    %v378 = vadd.f32 %v376, %v377
    %v379 = vrot.slane %v378, 1
    %v380 = vadd.f32 %v378, %v379
    %v381 = vsel %vm331, %v326, 0.0
    %v382 = vrot.slane %v381, 4
    %v383 = vadd.f32 %v381, %v382
    %v384 = vrot.slane %v383, 2
    %v385 = vadd.f32 %v383, %v384
    %v386 = vrot.slane %v385, 1
    %v387 = vadd.f32 %v385, %v386
    %v388 = vrcp.pop 4.0
    %v389 = vmul.f32 %v338, %v388
    %v390 = vmul.f32 %v345, %v388
    %v391 = vmul.f32 %v352, %v388
    %v392 = vmul.f32 %v359, %v388
    %v393 = vmul.f32 %v366, %v388
    %v394 = vmul.f32 %v373, %v388
    %v395 = vmul.f32 %v380, %v388
    %v396 = vmul.f32 %v387, %v388
    %s397 = smul.u32 0, 8
    %vm406 = vcmask 1041409
    %v407 = vsel %vm406, %v390, %v389
    %vm408 = vcmask 1042434
    %v409 = vsel %vm408, %v391, %v407
    %vm410 = vcmask 1043459
    %v411 = vsel %vm410, %v392, %v409
    %vm412 = vcmask 1044484
    %v413 = vsel %vm412, %v393, %v411
    %vm414 = vcmask 1045509
    %v415 = vsel %vm414, %v394, %v413
    %vm416 = vcmask 1046534
    %v417 = vsel %vm416, %v395, %v415
    %vm418 = vcmask 1047559
    %v419 = vsel %vm418, %v396, %v417
    %s421 = scalar_lea.vmem [#allocation2], %s397
    %422 = vst [vmem:[%s421] sm:$0xff] %v419
    // Predicated region
    $region38: #{tpu_custom_call.1} parent=1 // pred_check
      %p423 = pneg %p81
    $region39: #{tpu_custom_call.1} parent=1 // pred_check_branch
      %425 = sbr.rel (%p423) target = $region41
    $region40: #{tpu_custom_call.1} parent=1 // pred_region
      %v426 = vld [vmem:[#allocation2] sm:$0xff]
      %v427 = vpack.c.bf16 %v426, %v426
      %v428 = vld [vmem:[#allocation8] sm:$0xf]
      %v429 = vld [vmem:[#allocation8 + $0x4] sm:$0xf]
      %v430 = vld [vmem:[#allocation8 + $0x8] sm:$0xf]
      %v431 = vld [vmem:[#allocation8 + $0xc] sm:$0xf]
      %v432 = vld [vmem:[#allocation8 + $0x10] sm:$0xf]
      %v433 = vld [vmem:[#allocation8 + $0x14] sm:$0xf]
      %v434 = vld [vmem:[#allocation8 + $0x18] sm:$0xf]
      %v435 = vld [vmem:[#allocation8 + $0x1c] sm:$0xf]
      %v436 = vld [vmem:[#allocation8 + $0x20] sm:$0xf]
      %v437 = vld [vmem:[#allocation8 + $0x24] sm:$0xf]
      %v438 = vld [vmem:[#allocation8 + $0x28] sm:$0xf]
      %v439 = vld [vmem:[#allocation8 + $0x2c] sm:$0xf]
      %v440 = vld [vmem:[#allocation8 + $0x30] sm:$0xf]
      %v441 = vld [vmem:[#allocation8 + $0x34] sm:$0xf]
      %v442 = vld [vmem:[#allocation8 + $0x38] sm:$0xf]
      %v443 = vld [vmem:[#allocation8 + $0x3c] sm:$0xf]
      %v460 = vunpack.c.l.b16 %v428
      %v461 = vunpack.c.l.b16 %v429
      %v462 = vunpack.c.l.b16 %v430
      %v463 = vunpack.c.l.b16 %v431
      %v464 = vunpack.c.l.b16 %v432
      %v465 = vunpack.c.l.b16 %v433
      %v466 = vunpack.c.l.b16 %v434
      %v467 = vunpack.c.l.b16 %v435
      %v468 = vunpack.c.l.b16 %v436
      %v469 = vunpack.c.l.b16 %v437
      %v470 = vunpack.c.l.b16 %v438
      %v471 = vunpack.c.l.b16 %v439
      %v472 = vunpack.c.l.b16 %v440
      %v473 = vunpack.c.l.b16 %v441
      %v474 = vunpack.c.l.b16 %v442
      %v475 = vunpack.c.l.b16 %v443
      %v476 = vpack.c.b16 %v461, %v460
      %v477 = vpack.c.b16 %v463, %v462
      %v478 = vpack.c.b16 %v465, %v464
      %v479 = vpack.c.b16 %v467, %v466
      %v480 = vpack.c.b16 %v469, %v468
      %v481 = vpack.c.b16 %v471, %v470
      %v482 = vpack.c.b16 %v473, %v472
      %v483 = vpack.c.b16 %v475, %v474
      %492 = vmatprep.subr.bf16.mxu0 0
      %493 = vmatpush1.bf16.msra.mxu0 %v476
      %494 = vmatprep.subr.bf16.mxu0 0
      %495 = vmatpush1.bf16.msra.mxu0 %v477
      %496 = vmatprep.subr.bf16.mxu0 0
      %497 = vmatpush1.bf16.msra.mxu0 %v478
      %498 = vmatprep.subr.bf16.mxu0 0
      %499 = vmatpush1.bf16.msra.mxu0 %v479
      %500 = vmatprep.subr.bf16.mxu0 0
      %501 = vmatpush1.bf16.msra.mxu0 %v480
      %502 = vmatprep.subr.bf16.mxu0 0
      %503 = vmatpush1.bf16.msra.mxu0 %v481
      %504 = vmatprep.subr.bf16.mxu0 0
      %505 = vmatpush1.bf16.msra.mxu0 %v482
      %506 = vmatprep.subr.bf16.mxu0 0
      %507 = vmatpush1.bf16.msra.mxu0 %v483
      %508 = vmatprep.subr.bf16.mxu0 0
      %509 = vmatpush1.bf16.msra.mxu0 0
      %510 = vmatprep.subr.bf16.mxu0 0
      %511 = vmatpush1.bf16.msra.mxu0 0
      %512 = vmatprep.subr.bf16.mxu0 0
      %513 = vmatpush1.bf16.msra.mxu0 0
      %514 = vmatprep.subr.bf16.mxu0 0
      %515 = vmatpush1.bf16.msra.mxu0 0
      %516 = vmatprep.subr.bf16.mxu0 0
      %517 = vmatpush1.bf16.msra.mxu0 0
      %518 = vmatprep.subr.bf16.mxu0 0
      %519 = vmatpush1.bf16.msra.mxu0 0
      %520 = vmatprep.subr.bf16.mxu0 0
      %521 = vmatpush1.bf16.msra.mxu0 0
      %522 = vmatprep.subr.bf16.mxu0 0
      %523 = vmatpush1.bf16.msra.mxu0 0
      %524 = vmatprep.mubr.bf16.mxu0 0
      %525 = vmatmul.mubr.bf16.gmra.mrb[0].mxu0 %v427
      %v526 = vpop.f32.mrb[0].mxu0
      %v527 = vadd.f32 0.0, %v526
      %v528 = vpop.f32.mrb[0].mxu0
      %v529 = vpop.f32.mrb[0].mxu0
      %v530 = vpop.f32.mrb[0].mxu0
      %531 = vdwg.mxu0
      %v532 = vmul.f32 %v527, %v527
      %533 = vadd.xlane.f32.xlu0 %v532
      %v534 = vpop.xlane.xlu0 %533
      %v535 = vadd.f32 %v534, 1e-12
      %v536 = vrsqrt.pop %v535
      %v537 = vmul.f32 %v527, %v536
      %v538 = vpack.c.bf16 %v537, %v537
      %v539 = vld [vmem:[#allocation9] sm:$0xf]
      %v540 = vld [vmem:[#allocation9 + $0x4] sm:$0xf]
      %v541 = vld [vmem:[#allocation9 + $0x8] sm:$0xf]
      %v542 = vld [vmem:[#allocation9 + $0xc] sm:$0xf]
      %v543 = vld [vmem:[#allocation9 + $0x10] sm:$0xf]
      %v544 = vld [vmem:[#allocation9 + $0x14] sm:$0xf]
      %v545 = vld [vmem:[#allocation9 + $0x18] sm:$0xf]
      %v546 = vld [vmem:[#allocation9 + $0x1c] sm:$0xf]
      %v547 = vld [vmem:[#allocation9 + $0x20] sm:$0xf]
      %v548 = vld [vmem:[#allocation9 + $0x24] sm:$0xf]
      %v549 = vld [vmem:[#allocation9 + $0x28] sm:$0xf]
      %v550 = vld [vmem:[#allocation9 + $0x2c] sm:$0xf]
      %v551 = vld [vmem:[#allocation9 + $0x30] sm:$0xf]
      %v552 = vld [vmem:[#allocation9 + $0x34] sm:$0xf]
      %v553 = vld [vmem:[#allocation9 + $0x38] sm:$0xf]
      %v554 = vld [vmem:[#allocation9 + $0x3c] sm:$0xf]
      %v571 = vunpack.c.l.b16 %v539
      %v572 = vunpack.c.l.b16 %v540
      %v573 = vunpack.c.l.b16 %v541
      %v574 = vunpack.c.l.b16 %v542
      %v575 = vunpack.c.l.b16 %v543
      %v576 = vunpack.c.l.b16 %v544
      %v577 = vunpack.c.l.b16 %v545
      %v578 = vunpack.c.l.b16 %v546
      %v579 = vunpack.c.l.b16 %v547
      %v580 = vunpack.c.l.b16 %v548
      %v581 = vunpack.c.l.b16 %v549
      %v582 = vunpack.c.l.b16 %v550
      %v583 = vunpack.c.l.b16 %v551
      %v584 = vunpack.c.l.b16 %v552
      %v585 = vunpack.c.l.b16 %v553
      %v586 = vunpack.c.l.b16 %v554
      %v587 = vpack.c.b16 %v572, %v571
      %v588 = vpack.c.b16 %v574, %v573
      %v589 = vpack.c.b16 %v576, %v575
      %v590 = vpack.c.b16 %v578, %v577
      %v591 = vpack.c.b16 %v580, %v579
      %v592 = vpack.c.b16 %v582, %v581
      %v593 = vpack.c.b16 %v584, %v583
      %v594 = vpack.c.b16 %v586, %v585
      %603 = vmatprep.subr.bf16.mxu0 0
      %604 = vmatpush1.bf16.msra.mxu0 %v587
      %605 = vmatprep.subr.bf16.mxu0 0
      %606 = vmatpush1.bf16.msra.mxu0 %v588
      %607 = vmatprep.subr.bf16.mxu0 0
      %608 = vmatpush1.bf16.msra.mxu0 %v589
      %609 = vmatprep.subr.bf16.mxu0 0
      %610 = vmatpush1.bf16.msra.mxu0 %v590
      %611 = vmatprep.subr.bf16.mxu0 0
      %612 = vmatpush1.bf16.msra.mxu0 %v591
      %613 = vmatprep.subr.bf16.mxu0 0
      %614 = vmatpush1.bf16.msra.mxu0 %v592
      %615 = vmatprep.subr.bf16.mxu0 0
      %616 = vmatpush1.bf16.msra.mxu0 %v593
      %617 = vmatprep.subr.bf16.mxu0 0
      %618 = vmatpush1.bf16.msra.mxu0 %v594
      %619 = vmatprep.subr.bf16.mxu0 0
      %620 = vmatpush1.bf16.msra.mxu0 0
      %621 = vmatprep.subr.bf16.mxu0 0
      %622 = vmatpush1.bf16.msra.mxu0 0
      %623 = vmatprep.subr.bf16.mxu0 0
      %624 = vmatpush1.bf16.msra.mxu0 0
      %625 = vmatprep.subr.bf16.mxu0 0
      %626 = vmatpush1.bf16.msra.mxu0 0
      %627 = vmatprep.subr.bf16.mxu0 0
      %628 = vmatpush1.bf16.msra.mxu0 0
      %629 = vmatprep.subr.bf16.mxu0 0
      %630 = vmatpush1.bf16.msra.mxu0 0
      %631 = vmatprep.subr.bf16.mxu0 0
      %632 = vmatpush1.bf16.msra.mxu0 0
      %633 = vmatprep.subr.bf16.mxu0 0
      %634 = vmatpush1.bf16.msra.mxu0 0
      %635 = vmatprep.mubr.bf16.mxu0 0
      %636 = vmatmul.mubr.bf16.gmra.mrb[0].mxu0 %v538
      %v637 = vpop.f32.mrb[0].mxu0
      %v638 = vadd.f32 0.0, %v637
      %v639 = vpop.f32.mrb[0].mxu0
      %v640 = vpop.f32.mrb[0].mxu0
      %v641 = vpop.f32.mrb[0].mxu0
      %642 = vdwg.mxu0
      %643 = vst [vmem:[#allocation11] sm:$0xff] %v638
    $region41: #{tpu_custom_call.1} parent=1 // pred_fallthru
      _
    // Predicated region
    $region42: #{tpu_custom_call.1} parent=1 // pred_check
      _
    $region43: #{tpu_custom_call.1} parent=1 // pred_check_branch
      %645 = sbr.rel (0) target = $region45
    $region44: #{tpu_custom_call.1} parent=1 // pred_region
      %s647 = ssub.s32 128, 128
      %648 = vsyncadd [#allocation5], %s647
      %s650 = sshll.u32 [#allocation11], 4
      %s651 = int_to_ptr.vmem [resolvable:$true] %s650
      %653 = dma.vmem_to_hbm [thread:$0]  %s651, 128, %s4, [#allocation5]
    $region45: #{tpu_custom_call.1} parent=1 // pred_fallthru
      _
    // Predicated region
    $region46: #{tpu_custom_call.1} parent=1 // pred_check
      _
    $region47: #{tpu_custom_call.1} parent=1 // pred_check_branch
      %655 = sbr.rel (0) target = $region49
    $region48: #{tpu_custom_call.1} parent=1 // pred_region
      %656 = dma.done [#allocation5], 128
    $region49: #{tpu_custom_call.1} parent=1 // pred_fallthru
      _
    %657 = vsyncpa [#allocation4], 1
    %658 = vsyncpa [#allocation7], 1
    %659 = vsyncpa [#allocation10], 1
    %660 = vsyncpa [#allocation5], 1

</llo_original>
